<compile_context>
chip_gen: v5e
topology: v5e:2x2
jax: 0.10.0
libtpu: 0.0.40
codegen_flags: <defaults>
</compile_context>

<pallas_src>
import functools
import numpy as np
import jax
import jax.numpy as jnp
from jax.experimental import pallas as pl
from jax.experimental.pallas import tpu as pltpu


def _gru_unit_kernel(
    # row-tiled data
    ym_ref, ymt_ref, xd_ref, xm_ref,
    # fused gate params (update_gate | update_gate_target | reset_gate)
    w1y_g, w1x_g, b1_g, w2_g, b2_g,
    # new_state_net params (layer-1 split into y/x halves)
    ns_w1y, ns_w1x, ns_b1, ns_w2, ns_b2,
    # combined output: lanes [0:L] = new_y, lanes [L:2L] = new_y_target
    out_ref,
    *, L,
):
    ym = ym_ref[...]
    ymt = ymt_ref[...]
    xd = xd_ref[...]
    xm = xm_ref[...]

    ym_bf = ym.astype(jnp.bfloat16)
    xd_bf = xd.astype(jnp.bfloat16)

    # --- fused layer-1 of the three gates that share [y_mean, x_data] ------
    pre1 = (
        jnp.dot(ym_bf, w1y_g[...], preferred_element_type=jnp.float32)
        + jnp.dot(xd_bf, w1x_g[...], preferred_element_type=jnp.float32)
        + b1_g[...]
    )                                                   # (TM, 3*nu)
    h_g = jnp.tanh(pre1)

    # --- fused (block-diagonal) layer-2 of the three gates ------------------
    g = jax.nn.sigmoid(
        jnp.dot(h_g.astype(jnp.bfloat16), w2_g[...],
                preferred_element_type=jnp.float32)
        + b2_g[...]
    )                                                   # (TM, 3*L)
    update_gate = g[:, 0 * L:1 * L]
    update_gate_target = g[:, 1 * L:2 * L]
    reset_gate = g[:, 2 * L:3 * L]
    # NOTE: reset_gate_target from the torch module is dead code and omitted.

    # --- new_state_net on [y_mean * reset_gate, x_data] ---------------------
    ry_bf = (ym * reset_gate).astype(jnp.bfloat16)
    h_ns = jnp.tanh(
        jnp.dot(ry_bf, ns_w1y[...], preferred_element_type=jnp.float32)
        + jnp.dot(xd_bf, ns_w1x[...], preferred_element_type=jnp.float32)
        + ns_b1[...]
    )                                                   # (TM, nu)
    new_state = (
        jnp.dot(h_ns.astype(jnp.bfloat16), ns_w2[...],
                preferred_element_type=jnp.float32)
        + ns_b2[...]
    )                                                   # (TM, L)

    # --- GRU blend + observation mask (all f32) -----------------------------
    new_y = (1.0 - update_gate) * new_state + update_gate * ym
    new_yt = (1.0 - update_gate_target) * new_state + update_gate_target * ymt

    mask = (jnp.sum(xm, axis=-1, keepdims=True) > 0.0).astype(jnp.float32)
    out_y = mask * new_y + (1.0 - mask) * ym
    out_yt = mask * new_yt + (1.0 - mask) * ymt

    out_ref[...] = jnp.concatenate([out_y, out_yt], axis=-1)


def gru_unit_forward(y_mean, y_mean_target, x, params, *, tile_m=512):
    """params: dict of nets, each a tuple (w1 (in,nu), b1 (1,nu), w2 (nu,L), b2 (1,L)).

    reset_gate_target params may be present but are ignored (dead in forward).
    """
    lead = y_mean.shape[:-1]
    L = y_mean.shape[-1]
    d_full = x.shape[-1]
    D = d_full // 2
    Dm = d_full - D
    M = int(np.prod(lead)) if lead else 1

    ym = y_mean.reshape(M, L).astype(jnp.float32)
    ymt = y_mean_target.reshape(M, L).astype(jnp.float32)
    xd = x[..., :D].reshape(M, D).astype(jnp.float32)
    xm = x[..., D:].reshape(M, Dm).astype(jnp.float32)

    ug_w1, ug_b1, ug_w2, ug_b2 = params["update_gate"]
    ugt_w1, ugt_b1, ugt_w2, ugt_b2 = params["update_gate_target"]
    rg_w1, rg_b1, rg_w2, rg_b2 = params["reset_gate"]
    ns_w1, ns_b1, ns_w2, ns_b2 = params["new_state_net"]
    nu = ug_w1.shape[1]

    # Fused gate layer-1: split each w1 into y-rows / x-rows, concat on out dim.
    w1y_g = jnp.concatenate([ug_w1[:L], ugt_w1[:L], rg_w1[:L]], axis=1).astype(jnp.bfloat16)
    w1x_g = jnp.concatenate([ug_w1[L:], ugt_w1[L:], rg_w1[L:]], axis=1).astype(jnp.bfloat16)
    b1_g = jnp.concatenate([ug_b1, ugt_b1, rg_b1], axis=1).astype(jnp.float32)

    # Fused gate layer-2: block-diagonal (3*nu, 3*L).
    zero = jnp.zeros((nu, L), jnp.float32)
    w2_g = jnp.concatenate([
        jnp.concatenate([ug_w2, zero, zero], axis=1),
        jnp.concatenate([zero, ugt_w2, zero], axis=1),
        jnp.concatenate([zero, zero, rg_w2], axis=1),
    ], axis=0).astype(jnp.bfloat16)
    b2_g = jnp.concatenate([ug_b2, ugt_b2, rg_b2], axis=1).astype(jnp.float32)

    ns_w1y = ns_w1[:L].astype(jnp.bfloat16)
    ns_w1x = ns_w1[L:].astype(jnp.bfloat16)
    ns_b1f = ns_b1.astype(jnp.float32)
    ns_w2b = ns_w2.astype(jnp.bfloat16)
    ns_b2f = ns_b2.astype(jnp.float32)

    # Row tiling: bound VMEM regardless of M, pad M to a multiple of the tile.
    tm = tile_m if M >= tile_m else max(8, ((M + 7) // 8) * 8)
    Mp = ((M + tm - 1) // tm) * tm
    if Mp != M:
        pad = ((0, Mp - M), (0, 0))
        ym_p, ymt_p = jnp.pad(ym, pad), jnp.pad(ymt, pad)
        xd_p, xm_p = jnp.pad(xd, pad), jnp.pad(xm, pad)
    else:
        ym_p, ymt_p, xd_p, xm_p = ym, ymt, xd, xm

    grid = (pl.cdiv(Mp, tm),)

    def row_spec(w):
        return pl.BlockSpec((tm, w), lambda i: (i, 0))

    def full_spec(shape):
        return pl.BlockSpec(shape, lambda i: (0, 0))

    weights = (w1y_g, w1x_g, b1_g, w2_g, b2_g,
               ns_w1y, ns_w1x, ns_b1f, ns_w2b, ns_b2f)

    in_specs = ([row_spec(L), row_spec(L), row_spec(D), row_spec(Dm)]
                + [full_spec(w.shape) for w in weights])

    out = pl.pallas_call(
        functools.partial(_gru_unit_kernel, L=L),
        out_shape=jax.ShapeDtypeStruct((Mp, 2 * L), jnp.float32),
        grid=grid,
        in_specs=in_specs,
        out_specs=pl.BlockSpec((tm, 2 * L), lambda i: (i, 0)),
        compiler_params=pltpu.CompilerParams(
            dimension_semantics=("parallel",)),
    )(ym_p, ymt_p, xd_p, xm_p, *weights)

    new_y = out[:M, :L].reshape(*lead, L)
    new_y_target = out[:M, L:].reshape(*lead, L)
    return new_y, new_y_target


def _init_params(key, latent_dim, input_dim, n_units):
    """Deterministic init mimicking utils.init_network_weights (normal std=0.1, zero bias)."""
    in_dim = latent_dim + input_dim
    params = {}
    names = ("update_gate", "update_gate_target", "reset_gate",
             "reset_gate_target", "new_state_net")
    keys = jax.random.split(key, 2 * len(names))
    for i, name in enumerate(names):
        k1, k2 = keys[2 * i], keys[2 * i + 1]
        w1 = 0.1 * jax.random.normal(k1, (in_dim, n_units), dtype=jnp.float32)
        b1 = jnp.zeros((1, n_units), dtype=jnp.float32)
        w2 = 0.1 * jax.random.normal(k2, (n_units, latent_dim), dtype=jnp.float32)
        b2 = jnp.zeros((1, latent_dim), dtype=jnp.float32)
        params[name] = (w1, b1, w2, b2)
    return params


def _reference(y_mean, y_mean_target, x, params):
    """Pure-JAX f32 reference mirroring the torch forward."""
    D = x.shape[-1] // 2
    xd, xm = x[..., :D], x[..., D:]

    def mlp(inp, p, sig):
        w1, b1, w2, b2 = p
        h = jnp.tanh(inp @ w1 + b1[0])
        o = h @ w2 + b2[0]
        return jax.nn.sigmoid(o) if sig else o

    y_concat = jnp.concatenate([y_mean, xd], -1)
    u = mlp(y_concat, params["update_gate"], True)
    r = mlp(y_concat, params["reset_gate"], True)
    ut = mlp(y_concat, params["update_gate_target"], True)
    _ = mlp(y_concat, params["reset_gate_target"], True)  # dead, kept for parity
    concat = jnp.concatenate([y_mean * r, xd], -1)
    ns = mlp(concat, params["new_state_net"], False)
    new_y = (1 - u) * ns + u * y_mean
    new_yt = (1 - ut) * ns + ut * y_mean_target
    mask = (jnp.sum(xm, -1, keepdims=True) > 0).astype(jnp.float32)
    new_y = mask * new_y + (1 - mask) * y_mean
    new_yt = mask * new_yt + (1 - mask) * y_mean_target
    return new_y, new_yt


if __name__ == "__main__":
    # latent_dim=16, input_dim=16 (x last dim = 2*input_dim = 32), n_units=64.
    latent_dim, input_dim, n_units = 16, 16, 64
    batch, seq = 2, 8

    root = jax.random.PRNGKey(0)
    k_ym, k_ymt, k_x, k_m, k_p = jax.random.split(root, 5)

    y_mean = jax.random.normal(k_ym, (batch, seq, latent_dim), dtype=jnp.float32)
    y_mean_target = jax.random.normal(k_ymt, (batch, seq, latent_dim), dtype=jnp.float32)
    x_data = jax.random.normal(k_x, (batch, seq, input_dim), dtype=jnp.float32)
    x_mask = (jax.random.uniform(k_m, (batch, seq, input_dim)) > 0.5).astype(jnp.float32)
    # force one fully-unobserved row to exercise both mask branches
    x_mask = x_mask.at[0, 0].set(0.0)
    x = jnp.concatenate([x_data, x_mask], axis=-1)

    params = _init_params(k_p, latent_dim, input_dim, n_units)

    new_y, new_y_target = gru_unit_forward(y_mean, y_mean_target, x, params)
    jax.block_until_ready((new_y, new_y_target))

    ref_y, ref_yt = _reference(y_mean, y_mean_target, x, params)
    # Kernel uses bf16 MXU operands (f32 accumulation) -> compare against the
    # f32 reference with a correspondingly loosened tolerance.
    np.testing.assert_allclose(np.asarray(new_y), np.asarray(ref_y), rtol=2e-2, atol=2e-2)
    np.testing.assert_allclose(np.asarray(new_y_target), np.asarray(ref_yt), rtol=2e-2, atol=2e-2)

    print("KERNEL_OK")
</pallas_src>

<mosaic_0001>
module attributes {stable_mosaic.version = 11 : i64} {
  func.func @_gru_unit_kernel(%arg0: i32, %arg1: memref<16x16xf32, #tpu.memory_space<vmem>>, %arg2: memref<16x16xf32, #tpu.memory_space<vmem>>, %arg3: memref<16x16xf32, #tpu.memory_space<vmem>>, %arg4: memref<16x16xf32, #tpu.memory_space<vmem>>, %arg5: memref<16x192xbf16, #tpu.memory_space<vmem>>, %arg6: memref<16x192xbf16, #tpu.memory_space<vmem>>, %arg7: memref<1x192xf32, #tpu.memory_space<vmem>>, %arg8: memref<192x48xbf16, #tpu.memory_space<vmem>>, %arg9: memref<1x48xf32, #tpu.memory_space<vmem>>, %arg10: memref<16x64xbf16, #tpu.memory_space<vmem>>, %arg11: memref<16x64xbf16, #tpu.memory_space<vmem>>, %arg12: memref<1x64xf32, #tpu.memory_space<vmem>>, %arg13: memref<64x16xbf16, #tpu.memory_space<vmem>>, %arg14: memref<1x16xf32, #tpu.memory_space<vmem>>, %arg15: memref<16x32xf32, #tpu.memory_space<vmem>>) attributes {dimension_semantics = [#tpu.dimension_semantics<parallel>], iteration_bounds = array<i64: 1>, scalar_prefetch = 0 : i64, scratch_operands = 0 : i64, tpu.core_type = #tpu.core_type<tc>, window_params = [{transform_indices = @transform_0, window_bounds = array<i64: 16, 16>}, {transform_indices = @transform_1, window_bounds = array<i64: 16, 16>}, {transform_indices = @transform_2, window_bounds = array<i64: 16, 16>}, {transform_indices = @transform_3, window_bounds = array<i64: 16, 16>}, {pipeline_mode = #tpu.pipeline_mode<synchronous>, transform_indices = @transform_4, window_bounds = array<i64: 16, 192>}, {pipeline_mode = #tpu.pipeline_mode<synchronous>, transform_indices = @transform_5, window_bounds = array<i64: 16, 192>}, {pipeline_mode = #tpu.pipeline_mode<synchronous>, transform_indices = @transform_6, window_bounds = array<i64: 1, 192>}, {pipeline_mode = #tpu.pipeline_mode<synchronous>, transform_indices = @transform_7, window_bounds = array<i64: 192, 48>}, {pipeline_mode = #tpu.pipeline_mode<synchronous>, transform_indices = @transform_8, window_bounds = array<i64: 1, 48>}, {pipeline_mode = #tpu.pipeline_mode<synchronous>, transform_indices = @transform_9, window_bounds = array<i64: 16, 64>}, {pipeline_mode = #tpu.pipeline_mode<synchronous>, transform_indices = @transform_10, window_bounds = array<i64: 16, 64>}, {pipeline_mode = #tpu.pipeline_mode<synchronous>, transform_indices = @transform_11, window_bounds = array<i64: 1, 64>}, {pipeline_mode = #tpu.pipeline_mode<synchronous>, transform_indices = @transform_12, window_bounds = array<i64: 64, 16>}, {pipeline_mode = #tpu.pipeline_mode<synchronous>, transform_indices = @transform_13, window_bounds = array<i64: 1, 16>}, {transform_indices = @transform_14, window_bounds = array<i64: 16, 32>}]} {
    %c0 = arith.constant 0 : index
    %c0_0 = arith.constant 0 : index
    %0 = vector.load %arg1[%c0, %c0_0] : memref<16x16xf32, #tpu.memory_space<vmem>>, vector<16x16xf32>
    %c0_1 = arith.constant 0 : index
    %c0_2 = arith.constant 0 : index
    %1 = vector.load %arg2[%c0_1, %c0_2] : memref<16x16xf32, #tpu.memory_space<vmem>>, vector<16x16xf32>
    %c0_3 = arith.constant 0 : index
    %c0_4 = arith.constant 0 : index
    %2 = vector.load %arg3[%c0_3, %c0_4] : memref<16x16xf32, #tpu.memory_space<vmem>>, vector<16x16xf32>
    %c0_5 = arith.constant 0 : index
    %c0_6 = arith.constant 0 : index
    %3 = vector.load %arg4[%c0_5, %c0_6] : memref<16x16xf32, #tpu.memory_space<vmem>>, vector<16x16xf32>
    %4 = arith.truncf %0 : vector<16x16xf32> to vector<16x16xbf16>
    %5 = arith.truncf %2 : vector<16x16xf32> to vector<16x16xbf16>
    %c0_7 = arith.constant 0 : index
    %c0_8 = arith.constant 0 : index
    %6 = vector.load %arg5[%c0_7, %c0_8] : memref<16x192xbf16, #tpu.memory_space<vmem>>, vector<16x192xbf16>
    %cst = arith.constant dense<0.000000e+00> : vector<16x192xf32>
    %7 = tpu.matmul %4, %6, %cst {dimension_numbers = #tpu.dot_dimension_numbers<[1], [0], [0], [1], [0, 0, 1, 1], [], []>} : vector<16x16xbf16>, vector<16x192xbf16>, vector<16x192xf32> -> vector<16x192xf32>
    %c0_9 = arith.constant 0 : index
    %c0_10 = arith.constant 0 : index
    %8 = vector.load %arg6[%c0_9, %c0_10] : memref<16x192xbf16, #tpu.memory_space<vmem>>, vector<16x192xbf16>
    %cst_11 = arith.constant dense<0.000000e+00> : vector<16x192xf32>
    %9 = tpu.matmul %5, %8, %cst_11 {dimension_numbers = #tpu.dot_dimension_numbers<[1], [0], [0], [1], [0, 0, 1, 1], [], []>} : vector<16x16xbf16>, vector<16x192xbf16>, vector<16x192xf32> -> vector<16x192xf32>
    %10 = arith.addf %7, %9 : vector<16x192xf32>
    %c0_12 = arith.constant 0 : index
    %c0_13 = arith.constant 0 : index
    %11 = vector.load %arg7[%c0_12, %c0_13] : memref<1x192xf32, #tpu.memory_space<vmem>>, vector<1x192xf32>
    %12 = vector.broadcast %11 : vector<1x192xf32> to vector<16x192xf32>
    %13 = arith.addf %10, %12 : vector<16x192xf32>
    %14 = math.tanh %13 : vector<16x192xf32>
    %15 = arith.truncf %14 : vector<16x192xf32> to vector<16x192xbf16>
    %c0_14 = arith.constant 0 : index
    %c0_15 = arith.constant 0 : index
    %16 = vector.load %arg8[%c0_14, %c0_15] : memref<192x48xbf16, #tpu.memory_space<vmem>>, vector<192x48xbf16>
    %cst_16 = arith.constant dense<0.000000e+00> : vector<16x48xf32>
    %17 = tpu.matmul %15, %16, %cst_16 {dimension_numbers = #tpu.dot_dimension_numbers<[1], [0], [0], [1], [0, 0, 1, 1], [], []>} : vector<16x192xbf16>, vector<192x48xbf16>, vector<16x48xf32> -> vector<16x48xf32>
    %c0_17 = arith.constant 0 : index
    %c0_18 = arith.constant 0 : index
    %18 = vector.load %arg9[%c0_17, %c0_18] : memref<1x48xf32, #tpu.memory_space<vmem>>, vector<1x48xf32>
    %19 = vector.broadcast %18 : vector<1x48xf32> to vector<16x48xf32>
    %20 = arith.addf %17, %19 : vector<16x48xf32>
    %21 = arith.negf %20 : vector<16x48xf32>
    %22 = math.exp %21 : vector<16x48xf32>
    %cst_19 = arith.constant 1.000000e+00 : f32
    %23 = vector.broadcast %cst_19 : f32 to vector<16x48xf32>
    %24 = arith.addf %23, %22 : vector<16x48xf32>
    %25 = arith.divf %23, %24 : vector<16x48xf32>
    %26 = vector.extract_strided_slice %25 {offsets = [0, 0], sizes = [16, 16], strides = [1, 1]} : vector<16x48xf32> to vector<16x16xf32>
    %27 = vector.extract_strided_slice %25 {offsets = [0, 16], sizes = [16, 16], strides = [1, 1]} : vector<16x48xf32> to vector<16x16xf32>
    %28 = vector.extract_strided_slice %25 {offsets = [0, 32], sizes = [16, 16], strides = [1, 1]} : vector<16x48xf32> to vector<16x16xf32>
    %29 = arith.mulf %0, %28 : vector<16x16xf32>
    %30 = arith.truncf %29 : vector<16x16xf32> to vector<16x16xbf16>
    %c0_20 = arith.constant 0 : index
    %c0_21 = arith.constant 0 : index
    %31 = vector.load %arg10[%c0_20, %c0_21] : memref<16x64xbf16, #tpu.memory_space<vmem>>, vector<16x64xbf16>
    %cst_22 = arith.constant dense<0.000000e+00> : vector<16x64xf32>
    %32 = tpu.matmul %30, %31, %cst_22 {dimension_numbers = #tpu.dot_dimension_numbers<[1], [0], [0], [1], [0, 0, 1, 1], [], []>} : vector<16x16xbf16>, vector<16x64xbf16>, vector<16x64xf32> -> vector<16x64xf32>
    %c0_23 = arith.constant 0 : index
    %c0_24 = arith.constant 0 : index
    %33 = vector.load %arg11[%c0_23, %c0_24] : memref<16x64xbf16, #tpu.memory_space<vmem>>, vector<16x64xbf16>
    %cst_25 = arith.constant dense<0.000000e+00> : vector<16x64xf32>
    %34 = tpu.matmul %5, %33, %cst_25 {dimension_numbers = #tpu.dot_dimension_numbers<[1], [0], [0], [1], [0, 0, 1, 1], [], []>} : vector<16x16xbf16>, vector<16x64xbf16>, vector<16x64xf32> -> vector<16x64xf32>
    %35 = arith.addf %32, %34 : vector<16x64xf32>
    %c0_26 = arith.constant 0 : index
    %c0_27 = arith.constant 0 : index
    %36 = vector.load %arg12[%c0_26, %c0_27] : memref<1x64xf32, #tpu.memory_space<vmem>>, vector<1x64xf32>
    %37 = vector.broadcast %36 : vector<1x64xf32> to vector<16x64xf32>
    %38 = arith.addf %35, %37 : vector<16x64xf32>
    %39 = math.tanh %38 : vector<16x64xf32>
    %40 = arith.truncf %39 : vector<16x64xf32> to vector<16x64xbf16>
    %c0_28 = arith.constant 0 : index
    %c0_29 = arith.constant 0 : index
    %41 = vector.load %arg13[%c0_28, %c0_29] : memref<64x16xbf16, #tpu.memory_space<vmem>>, vector<64x16xbf16>
    %cst_30 = arith.constant dense<0.000000e+00> : vector<16x16xf32>
    %42 = tpu.matmul %40, %41, %cst_30 {dimension_numbers = #tpu.dot_dimension_numbers<[1], [0], [0], [1], [0, 0, 1, 1], [], []>} : vector<16x64xbf16>, vector<64x16xbf16>, vector<16x16xf32> -> vector<16x16xf32>
    %c0_31 = arith.constant 0 : index
    %c0_32 = arith.constant 0 : index
    %43 = vector.load %arg14[%c0_31, %c0_32] : memref<1x16xf32, #tpu.memory_space<vmem>>, vector<1x16xf32>
    %44 = vector.broadcast %43 : vector<1x16xf32> to vector<16x16xf32>
    %45 = arith.addf %42, %44 : vector<16x16xf32>
    %cst_33 = arith.constant 1.000000e+00 : f32
    %46 = vector.broadcast %cst_33 : f32 to vector<16x16xf32>
    %47 = arith.subf %46, %26 : vector<16x16xf32>
    %48 = arith.mulf %47, %45 : vector<16x16xf32>
    %49 = arith.mulf %26, %0 : vector<16x16xf32>
    %50 = arith.addf %48, %49 : vector<16x16xf32>
    %cst_34 = arith.constant 1.000000e+00 : f32
    %51 = vector.broadcast %cst_34 : f32 to vector<16x16xf32>
    %52 = arith.subf %51, %27 : vector<16x16xf32>
    %53 = arith.mulf %52, %45 : vector<16x16xf32>
    %54 = arith.mulf %27, %1 : vector<16x16xf32>
    %55 = arith.addf %53, %54 : vector<16x16xf32>
    %cst_35 = arith.constant dense<0.000000e+00> : vector<16xf32>
    %56 = vector.multi_reduction <add>, %3, %cst_35 [1] : vector<16x16xf32> to vector<16xf32>
    %57 = vector.shape_cast %56 : vector<16xf32> to vector<16x1xf32>
    %cst_36 = arith.constant 0.000000e+00 : f32
    %58 = vector.broadcast %cst_36 : f32 to vector<16x1xf32>
    %59 = arith.cmpf ogt, %57, %58 : vector<16x1xf32>
    %60 = arith.extui %59 : vector<16x1xi1> to vector<16x1xi32>
    %61 = arith.sitofp %60 : vector<16x1xi32> to vector<16x1xf32>
    %62 = vector.broadcast %61 : vector<16x1xf32> to vector<16x16xf32>
    %63 = arith.mulf %62, %50 : vector<16x16xf32>
    %cst_37 = arith.constant 1.000000e+00 : f32
    %64 = vector.broadcast %cst_37 : f32 to vector<16x1xf32>
    %65 = arith.subf %64, %61 : vector<16x1xf32>
    %66 = vector.broadcast %65 : vector<16x1xf32> to vector<16x16xf32>
    %67 = arith.mulf %66, %0 : vector<16x16xf32>
    %68 = arith.addf %63, %67 : vector<16x16xf32>
    %69 = vector.broadcast %61 : vector<16x1xf32> to vector<16x16xf32>
    %70 = arith.mulf %69, %55 : vector<16x16xf32>
    %cst_38 = arith.constant 1.000000e+00 : f32
    %71 = vector.broadcast %cst_38 : f32 to vector<16x1xf32>
    %72 = arith.subf %71, %61 : vector<16x1xf32>
    %73 = vector.broadcast %72 : vector<16x1xf32> to vector<16x16xf32>
    %74 = arith.mulf %73, %1 : vector<16x16xf32>
    %75 = arith.addf %70, %74 : vector<16x16xf32>
    %76 = tpu.concatenate %68, %75 in 1 : vector<16x16xf32>, vector<16x16xf32> -> vector<16x32xf32>
    %c0_39 = arith.constant 0 : index
    %c0_40 = arith.constant 0 : index
    %77 = vector.load %arg15[%c0_39, %c0_40] : memref<16x32xf32, #tpu.memory_space<vmem>>, vector<16x32xf32>
    tpu.vector_store %arg15[%c0_39, %c0_40], %76 {strides = array<i32>} : memref<16x32xf32, #tpu.memory_space<vmem>>, vector<16x32xf32>,
    return
  }
  func.func @transform_0(%arg0: i32) -> (i32, i32) {
    %c0_i32 = arith.constant 0 : i32
    %c0_i32_0 = arith.constant 0 : i32
    return %arg0, %c0_i32 : i32, i32
  }
  func.func @transform_1(%arg0: i32) -> (i32, i32) {
    %c0_i32 = arith.constant 0 : i32
    %c0_i32_0 = arith.constant 0 : i32
    return %arg0, %c0_i32 : i32, i32
  }
  func.func @transform_2(%arg0: i32) -> (i32, i32) {
    %c0_i32 = arith.constant 0 : i32
    %c0_i32_0 = arith.constant 0 : i32
    return %arg0, %c0_i32 : i32, i32
  }
  func.func @transform_3(%arg0: i32) -> (i32, i32) {
    %c0_i32 = arith.constant 0 : i32
    %c0_i32_0 = arith.constant 0 : i32
    return %arg0, %c0_i32 : i32, i32
  }
  func.func @transform_4(%arg0: i32) -> (i32, i32) {
    %c0_i32 = arith.constant 0 : i32
    %c0_i32_0 = arith.constant 0 : i32
    %c0_i32_1 = arith.constant 0 : i32
    return %c0_i32, %c0_i32_0 : i32, i32
  }
  func.func @transform_5(%arg0: i32) -> (i32, i32) {
    %c0_i32 = arith.constant 0 : i32
    %c0_i32_0 = arith.constant 0 : i32
    %c0_i32_1 = arith.constant 0 : i32
    return %c0_i32, %c0_i32_0 : i32, i32
  }
  func.func @transform_6(%arg0: i32) -> (i32, i32) {
    %c0_i32 = arith.constant 0 : i32
    %c0_i32_0 = arith.constant 0 : i32
    %c0_i32_1 = arith.constant 0 : i32
    return %c0_i32, %c0_i32_0 : i32, i32
  }
  func.func @transform_7(%arg0: i32) -> (i32, i32) {
    %c0_i32 = arith.constant 0 : i32
    %c0_i32_0 = arith.constant 0 : i32
    %c0_i32_1 = arith.constant 0 : i32
    return %c0_i32, %c0_i32_0 : i32, i32
  }
  func.func @transform_8(%arg0: i32) -> (i32, i32) {
    %c0_i32 = arith.constant 0 : i32
    %c0_i32_0 = arith.constant 0 : i32
    %c0_i32_1 = arith.constant 0 : i32
    return %c0_i32, %c0_i32_0 : i32, i32
  }
  func.func @transform_9(%arg0: i32) -> (i32, i32) {
    %c0_i32 = arith.constant 0 : i32
    %c0_i32_0 = arith.constant 0 : i32
    %c0_i32_1 = arith.constant 0 : i32
    return %c0_i32, %c0_i32_0 : i32, i32
  }
  func.func @transform_10(%arg0: i32) -> (i32, i32) {
    %c0_i32 = arith.constant 0 : i32
    %c0_i32_0 = arith.constant 0 : i32
    %c0_i32_1 = arith.constant 0 : i32
    return %c0_i32, %c0_i32_0 : i32, i32
  }
  func.func @transform_11(%arg0: i32) -> (i32, i32) {
    %c0_i32 = arith.constant 0 : i32
    %c0_i32_0 = arith.constant 0 : i32
    %c0_i32_1 = arith.constant 0 : i32
    return %c0_i32, %c0_i32_0 : i32, i32
  }
  func.func @transform_12(%arg0: i32) -> (i32, i32) {
    %c0_i32 = arith.constant 0 : i32
    %c0_i32_0 = arith.constant 0 : i32
    %c0_i32_1 = arith.constant 0 : i32
    return %c0_i32, %c0_i32_0 : i32, i32
  }
  func.func @transform_13(%arg0: i32) -> (i32, i32) {
    %c0_i32 = arith.constant 0 : i32
    %c0_i32_0 = arith.constant 0 : i32
    %c0_i32_1 = arith.constant 0 : i32
    return %c0_i32, %c0_i32_0 : i32, i32
  }
  func.func @transform_14(%arg0: i32) -> (i32, i32) {
    %c0_i32 = arith.constant 0 : i32
    %c0_i32_0 = arith.constant 0 : i32
    return %arg0, %c0_i32 : i32, i32
  }
}

</mosaic_0001>

<llo_original>
// kernel: tpu_custom_call.1
$region0: #{tpu_custom_call.1}
  #allocation0 [shape = 'u32[]', space=smem, size = 0x4, offset = 0x4, fixed_abs, tag = 'smem constant byte address 0x4 - core index']
  #allocation1 [shape = 'u32[72,128]{1,0:T(1,128)}', space=vmem, size = 0x9000, scoped, tag = 'internal scratch']
  %s0 = inlined_call_operand.vmem [shape: f32[16,16], index: 0, kind: input, shape index: {}]
  %s1 = inlined_call_operand.vmem [shape: f32[16,16], index: 1, kind: input, shape index: {}]
  %s2 = inlined_call_operand.vmem [shape: f32[16,16], index: 2, kind: input, shape index: {}]
  %s3 = inlined_call_operand.vmem [shape: f32[16,16], index: 3, kind: input, shape index: {}]
  %s4 = inlined_call_operand.vmem [shape: bf16[16,192], index: 4, kind: input, shape index: {}]
  %s5 = inlined_call_operand.vmem [shape: bf16[16,192], index: 5, kind: input, shape index: {}]
  %s6 = inlined_call_operand.vmem [shape: f32[1,192], index: 6, kind: input, shape index: {}]
  %s7 = inlined_call_operand.vmem [shape: bf16[192,48], index: 7, kind: input, shape index: {}]
  %s8 = inlined_call_operand.vmem [shape: f32[1,48], index: 8, kind: input, shape index: {}]
  %s9 = inlined_call_operand.vmem [shape: bf16[16,64], index: 9, kind: input, shape index: {}]
  %s10 = inlined_call_operand.vmem [shape: bf16[16,64], index: 10, kind: input, shape index: {}]
  %s11 = inlined_call_operand.vmem [shape: f32[1,64], index: 11, kind: input, shape index: {}]
  %s12 = inlined_call_operand.vmem [shape: bf16[64,16], index: 12, kind: input, shape index: {}]
  %s13 = inlined_call_operand.vmem [shape: f32[1,16], index: 13, kind: input, shape index: {}]
  %s14 = inlined_call_operand.hbm [shape: f32[16,32], index: 14, kind: output, shape index: {}]
  %s15 = sld [smem:[#allocation0]]
  $region66: #{tpu_custom_call.1} parent=0
    _
  %s17 = ssub.s32 1, %s15
  %s18 = scalar_select 0, %s17, %s15
  $region1: #{tpu_custom_call.1} parent=0
    #allocation2 [shape = 'u8[8192]{0}', space=vmem, size = 0x2000, scoped, tag = 'output window, operand 0, single buffered']
    #allocation3 [shape = 's32[1]{0}', space=sflag, size = 0x4, scoped, tag = 'scoped memory for tpu_custom_call.1']
    %19 = vsyncpa [#allocation3], 0
    // Predicated region
    $region2: #{tpu_custom_call.1} parent=1 // pred_check
      _
    $region3: #{tpu_custom_call.1} parent=1 // pred_check_branch
      %21 = sbr.rel (0) target = $region5
    $region4: #{tpu_custom_call.1} parent=1 // pred_region
      _
    $region5: #{tpu_custom_call.1} parent=1 // pred_fallthru
      _
    // Predicated region
    $region6: #{tpu_custom_call.1} parent=1 // pred_check
      _
    $region7: #{tpu_custom_call.1} parent=1 // pred_check_branch
      %23 = sbr.rel (0) target = $region9
    $region8: #{tpu_custom_call.1} parent=1 // pred_region
      _
    $region9: #{tpu_custom_call.1} parent=1 // pred_fallthru
      _
    // Predicated region
    $region10: #{tpu_custom_call.1} parent=1 // pred_check
      _
    $region11: #{tpu_custom_call.1} parent=1 // pred_check_branch
      %25 = sbr.rel (0) target = $region13
    $region12: #{tpu_custom_call.1} parent=1 // pred_region
      _
    $region13: #{tpu_custom_call.1} parent=1 // pred_fallthru
      _
    // Predicated region
    $region14: #{tpu_custom_call.1} parent=1 // pred_check
      _
    $region15: #{tpu_custom_call.1} parent=1 // pred_check_branch
      %27 = sbr.rel (0) target = $region17
    $region16: #{tpu_custom_call.1} parent=1 // pred_region
      _
    $region17: #{tpu_custom_call.1} parent=1 // pred_fallthru
      _
    // Predicated region
    $region18: #{tpu_custom_call.1} parent=1 // pred_check
      _
    $region19: #{tpu_custom_call.1} parent=1 // pred_check_branch
      %29 = sbr.rel (0) target = $region21
    $region20: #{tpu_custom_call.1} parent=1 // pred_region
      _
    $region21: #{tpu_custom_call.1} parent=1 // pred_fallthru
      _
    // Predicated region
    $region22: #{tpu_custom_call.1} parent=1 // pred_check
      _
    $region23: #{tpu_custom_call.1} parent=1 // pred_check_branch
      %31 = sbr.rel (0) target = $region25
    $region24: #{tpu_custom_call.1} parent=1 // pred_region
      _
    $region25: #{tpu_custom_call.1} parent=1 // pred_fallthru
      _
    // Predicated region
    $region26: #{tpu_custom_call.1} parent=1 // pred_check
      _
    $region27: #{tpu_custom_call.1} parent=1 // pred_check_branch
      %33 = sbr.rel (0) target = $region29
    $region28: #{tpu_custom_call.1} parent=1 // pred_region
      _
    $region29: #{tpu_custom_call.1} parent=1 // pred_fallthru
      _
    // Predicated region
    $region30: #{tpu_custom_call.1} parent=1 // pred_check
      _
    $region31: #{tpu_custom_call.1} parent=1 // pred_check_branch
      %35 = sbr.rel (0) target = $region33
    $region32: #{tpu_custom_call.1} parent=1 // pred_region
      _
    $region33: #{tpu_custom_call.1} parent=1 // pred_fallthru
      _
    // Predicated region
    $region34: #{tpu_custom_call.1} parent=1 // pred_check
      _
    $region35: #{tpu_custom_call.1} parent=1 // pred_check_branch
      %37 = sbr.rel (0) target = $region37
    $region36: #{tpu_custom_call.1} parent=1 // pred_region
      _
    $region37: #{tpu_custom_call.1} parent=1 // pred_fallthru
      _
    // Predicated region
    $region38: #{tpu_custom_call.1} parent=1 // pred_check
      _
    $region39: #{tpu_custom_call.1} parent=1 // pred_check_branch
      %39 = sbr.rel (0) target = $region41
    $region40: #{tpu_custom_call.1} parent=1 // pred_region
      _
    $region41: #{tpu_custom_call.1} parent=1 // pred_fallthru
      _
    // Predicated region
    $region42: #{tpu_custom_call.1} parent=1 // pred_check
      _
    $region43: #{tpu_custom_call.1} parent=1 // pred_check_branch
      %41 = sbr.rel (0) target = $region45
    $region44: #{tpu_custom_call.1} parent=1 // pred_region
      _
    $region45: #{tpu_custom_call.1} parent=1 // pred_fallthru
      _
    // Predicated region
    $region46: #{tpu_custom_call.1} parent=1 // pred_check
      _
    $region47: #{tpu_custom_call.1} parent=1 // pred_check_branch
      %43 = sbr.rel (0) target = $region49
    $region48: #{tpu_custom_call.1} parent=1 // pred_region
      _
    $region49: #{tpu_custom_call.1} parent=1 // pred_fallthru
      _
    // Predicated region
    $region50: #{tpu_custom_call.1} parent=1 // pred_check
      _
    $region51: #{tpu_custom_call.1} parent=1 // pred_check_branch
      %45 = sbr.rel (0) target = $region53
    $region52: #{tpu_custom_call.1} parent=1 // pred_region
      _
    $region53: #{tpu_custom_call.1} parent=1 // pred_fallthru
      _
    // Predicated region
    $region54: #{tpu_custom_call.1} parent=1 // pred_check
      _
    $region55: #{tpu_custom_call.1} parent=1 // pred_check_branch
      %47 = sbr.rel (0) target = $region57
    $region56: #{tpu_custom_call.1} parent=1 // pred_region
      _
    $region57: #{tpu_custom_call.1} parent=1 // pred_fallthru
      _
    %v49 = vld [vmem:[%s0] sm:$0xff]
    %v50 = vld [vmem:[%s0 + $0x8] sm:$0xff]
    %v51 = vld [vmem:[%s1] sm:$0xff]
    %v52 = vld [vmem:[%s1 + $0x8] sm:$0xff]
    %v53 = vld [vmem:[%s2] sm:$0xff]
    %v54 = vld [vmem:[%s2 + $0x8] sm:$0xff]
    %v55 = vld [vmem:[%s3] sm:$0xff]
    %v56 = vld [vmem:[%s3 + $0x8] sm:$0xff]
    %v57 = vpack.c.bf16 %v50, %v49
    %v58 = vpack.c.bf16 %v54, %v53
    %v59 = vld [vmem:[%s4] sm:$0xff]
    %v60 = vld [vmem:[%s4 + $0x8] sm:$0xff]
    %v61 = vld [vmem:[%s5] sm:$0xff]
    %v62 = vld [vmem:[%s5 + $0x8] sm:$0xff]
    %v65 = vunpack.c.l.b16 %v61
    %v66 = vunpack.c.h.b16 %v61
    %v67 = vunpack.c.l.b16 %v62
    %v68 = vunpack.c.h.b16 %v62
    %v69 = vpack.c.b16 %v67, %v65
    %v70 = vpack.c.b16 %v68, %v66
    %vm73 = vcmask 130048
    %v75 = vsel %vm73, %v58, 0
    %77 = vmatpush.bf16.msra.mxu0 0
    %78 = vmatpush.bf16.msra.mxu0 0
    %79 = vmatpush.bf16.msra.mxu0 0
    %80 = vmatpush.bf16.msra.mxu0 0
    %81 = vmatpush.bf16.msra.mxu0 0
    %82 = vmatpush.bf16.msra.mxu0 0
    %83 = vmatpush.bf16.msra.mxu0 0
    %84 = vmatpush.bf16.msra.mxu0 %v69
    %85 = vmatmul.bf16.gmra.mxu0 %v75
    %v86 = vpop.f32.mrf.mxu0
    %v87 = vadd.f32 0.0, %v86
    %v88 = vpop.f32.mrf.mxu0
    %v89 = vadd.f32 0.0, %v88
    %90 = vdwg.mxu0
    %91 = vmatpush.bf16.msra.mxu0 0
    %92 = vmatpush.bf16.msra.mxu0 0
    %93 = vmatpush.bf16.msra.mxu0 0
    %94 = vmatpush.bf16.msra.mxu0 0
    %95 = vmatpush.bf16.msra.mxu0 0
    %96 = vmatpush.bf16.msra.mxu0 0
    %97 = vmatpush.bf16.msra.mxu0 0
    %98 = vmatpush.bf16.msra.mxu0 %v70
    %99 = vmatmul.bf16.gmra.mxu0 %v75
    %v100 = vpop.f32.mrf.mxu0
    %v101 = vadd.f32 0.0, %v100
    %v102 = vpop.f32.mrf.mxu0
    %v103 = vadd.f32 0.0, %v102
    %104 = vdwg.mxu0
    %v107 = vunpack.c.l.b16 %v59
    %v108 = vunpack.c.h.b16 %v59
    %v109 = vunpack.c.l.b16 %v60
    %v110 = vunpack.c.h.b16 %v60
    %v111 = vpack.c.b16 %v109, %v107
    %v112 = vpack.c.b16 %v110, %v108
    %v116 = vsel %vm73, %v57, 0
    %118 = vmatpush.bf16.msra.mxu0 0
    %119 = vmatpush.bf16.msra.mxu0 0
    %120 = vmatpush.bf16.msra.mxu0 0
    %121 = vmatpush.bf16.msra.mxu0 0
    %122 = vmatpush.bf16.msra.mxu0 0
    %123 = vmatpush.bf16.msra.mxu0 0
    %124 = vmatpush.bf16.msra.mxu0 0
    %125 = vmatpush.bf16.msra.mxu0 %v111
    %126 = vmatmul.bf16.gmra.mxu0 %v116
    %v127 = vpop.f32.mrf.mxu0
    %v128 = vadd.f32 %v87, %v127
    %v129 = vpop.f32.mrf.mxu0
    %v130 = vadd.f32 %v89, %v129
    %131 = vdwg.mxu0
    %132 = vmatpush.bf16.msra.mxu0 0
    %133 = vmatpush.bf16.msra.mxu0 0
    %134 = vmatpush.bf16.msra.mxu0 0
    %135 = vmatpush.bf16.msra.mxu0 0
    %136 = vmatpush.bf16.msra.mxu0 0
    %137 = vmatpush.bf16.msra.mxu0 0
    %138 = vmatpush.bf16.msra.mxu0 0
    %139 = vmatpush.bf16.msra.mxu0 %v112
    %140 = vmatmul.bf16.gmra.mxu0 %v116
    %v141 = vpop.f32.mrf.mxu0
    %v142 = vadd.f32 %v101, %v141
    %v143 = vpop.f32.mrf.mxu0
    %v144 = vadd.f32 %v103, %v143
    %145 = vdwg.mxu0
    %v146 = vld [vmem:[%s6] sm:$0x3]
    %v148 = vperm.slane %v146, 0
    %v149 = vperm.slane %v146, 1
    %v152 = vadd.f32 %v128, %v148
    %v153 = vadd.f32 %v142, %v149
    %v154 = vadd.f32 %v130, %v148
    %v155 = vadd.f32 %v144, %v149
    %v156 = vtanh.pop %v152
    %v157 = vtanh.pop %v153
    %v158 = vtanh.pop %v154
    %v159 = vtanh.pop %v155
    %v160 = vpack.c.bf16 %v158, %v156
    %v161 = vpack.c.bf16 %v159, %v157
    %v162 = vld [vmem:[%s7] sm:$0xf]
    %v163 = vld [vmem:[%s7 + $0x4] sm:$0xf]
    %v164 = vld [vmem:[%s7 + $0x8] sm:$0xf]
    %v165 = vld [vmem:[%s7 + $0xc] sm:$0xf]
    %v166 = vld [vmem:[%s7 + $0x10] sm:$0xf]
    %v167 = vld [vmem:[%s7 + $0x14] sm:$0xf]
    %v168 = vld [vmem:[%s7 + $0x18] sm:$0xf]
    %v169 = vld [vmem:[%s7 + $0x1c] sm:$0xf]
    %v170 = vld [vmem:[%s7 + $0x20] sm:$0xf]
    %v171 = vld [vmem:[%s7 + $0x24] sm:$0xf]
    %v172 = vld [vmem:[%s7 + $0x28] sm:$0xf]
    %v173 = vld [vmem:[%s7 + $0x2c] sm:$0xf]
    %v174 = vld [vmem:[%s7 + $0x30] sm:$0xf]
    %v175 = vld [vmem:[%s7 + $0x34] sm:$0xf]
    %v176 = vld [vmem:[%s7 + $0x38] sm:$0xf]
    %v177 = vld [vmem:[%s7 + $0x3c] sm:$0xf]
    %v178 = vld [vmem:[%s7 + $0x40] sm:$0xf]
    %v179 = vld [vmem:[%s7 + $0x44] sm:$0xf]
    %v180 = vld [vmem:[%s7 + $0x48] sm:$0xf]
    %v181 = vld [vmem:[%s7 + $0x4c] sm:$0xf]
    %v182 = vld [vmem:[%s7 + $0x50] sm:$0xf]
    %v183 = vld [vmem:[%s7 + $0x54] sm:$0xf]
    %v184 = vld [vmem:[%s7 + $0x58] sm:$0xf]
    %v185 = vld [vmem:[%s7 + $0x5c] sm:$0xf]
    %v186 = vld [vmem:[%s8] sm:$0x1]
    %v188 = vperm.slane %v186, 0
    %v214 = vunpack.c.l.b16 %v162
    %v215 = vunpack.c.l.b16 %v163
    %v216 = vunpack.c.l.b16 %v164
    %v217 = vunpack.c.l.b16 %v165
    %v218 = vunpack.c.l.b16 %v166
    %v219 = vunpack.c.l.b16 %v167
    %v220 = vunpack.c.l.b16 %v168
    %v221 = vunpack.c.l.b16 %v169
    %v222 = vunpack.c.l.b16 %v170
    %v223 = vunpack.c.l.b16 %v171
    %v224 = vunpack.c.l.b16 %v172
    %v225 = vunpack.c.l.b16 %v173
    %v226 = vunpack.c.l.b16 %v174
    %v227 = vunpack.c.l.b16 %v175
    %v228 = vunpack.c.l.b16 %v176
    %v229 = vunpack.c.l.b16 %v177
    %v230 = vunpack.c.l.b16 %v178
    %v231 = vunpack.c.l.b16 %v179
    %v232 = vunpack.c.l.b16 %v180
    %v233 = vunpack.c.l.b16 %v181
    %v234 = vunpack.c.l.b16 %v182
    %v235 = vunpack.c.l.b16 %v183
    %v236 = vunpack.c.l.b16 %v184
    %v237 = vunpack.c.l.b16 %v185
    %v238 = vpack.c.b16 %v215, %v214
    %v239 = vpack.c.b16 %v217, %v216
    %v240 = vpack.c.b16 %v219, %v218
    %v241 = vpack.c.b16 %v221, %v220
    %v242 = vpack.c.b16 %v223, %v222
    %v243 = vpack.c.b16 %v225, %v224
    %v244 = vpack.c.b16 %v227, %v226
    %v245 = vpack.c.b16 %v229, %v228
    %v246 = vpack.c.b16 %v231, %v230
    %v247 = vpack.c.b16 %v233, %v232
    %v248 = vpack.c.b16 %v235, %v234
    %v249 = vpack.c.b16 %v237, %v236
    %vm262 = vcmask 523264
    %v264 = vsel %vm262, %v161, 0
    %266 = vmatpush.bf16.msra.mxu0 %v245
    %267 = vmatpush.bf16.msra.mxu0 %v244
    %268 = vmatpush.bf16.msra.mxu0 %v243
    %269 = vmatpush.bf16.msra.mxu0 %v242
    %270 = vmatpush.bf16.msra.mxu0 %v241
    %271 = vmatpush.bf16.msra.mxu0 %v240
    %272 = vmatpush.bf16.msra.mxu0 %v239
    %273 = vmatpush.bf16.msra.mxu0 %v238
    %274 = vmatmul.bf16.gmra.mxu0 %v160
    %v275 = vpop.f32.mrf.mxu0
    %v276 = vadd.f32 %v188, %v275
    %v277 = vpop.f32.mrf.mxu0
    %v278 = vadd.f32 %v188, %v277
    %279 = vdwg.mxu0
    %280 = vmatpush.bf16.msra.mxu0 0
    %281 = vmatpush.bf16.msra.mxu0 0
    %282 = vmatpush.bf16.msra.mxu0 0
    %283 = vmatpush.bf16.msra.mxu0 0
    %284 = vmatpush.bf16.msra.mxu0 %v249
    %285 = vmatpush.bf16.msra.mxu0 %v248
    %286 = vmatpush.bf16.msra.mxu0 %v247
    %287 = vmatpush.bf16.msra.mxu0 %v246
    %288 = vmatmul.bf16.gmra.mxu0 %v264
    %v289 = vpop.f32.mrf.mxu0
    %v290 = vadd.f32 %v276, %v289
    %v291 = vpop.f32.mrf.mxu0
    %v292 = vadd.f32 %v278, %v291
    %293 = vdwg.mxu0
    %v294 = vxor.u32 %v290, 2147483648
    %v295 = vxor.u32 %v292, 2147483648
    %v296 = vmul.f32 %v294, 1.442695
    %v297 = vpow.pop %v296
    %v298 = vmul.f32 %v295, 1.442695
    %v299 = vpow.pop %v298
    %v300 = vadd.f32 %v297, 1.0
    %v301 = vadd.f32 %v299, 1.0
    %v302 = vrcp.pop %v300
    %v303 = vmul.f32 %v300, %v302
    %v304 = vsub.f32 1.0, %v303
    %v305 = vmul.f32 %v302, %v304
    %v306 = vadd.f32 %v302, %v305
    %vm307 = vweird.f32 %v300
    %vm308 = vweird.f32 %v302
    %vm309 = vmor %vm307, %vm308
    %v310 = vsel %vm309, %v302, %v306
    %v311 = vand.u32 2147483647, %v300
    %vm312 = vcmp.eq.f32.partialorder %v311, 8.507059e+37
    %v313 = vand.u32 %v300, 2147483648
    %v314 = vor.u32 1.1754944e-38, %v313
    %v315 = vsel %vm312, %v314, %v310
    %v316 = vmul.f32 1.0, %v315
    %v317 = vrcp.pop %v301
    %v318 = vmul.f32 %v301, %v317
    %v319 = vsub.f32 1.0, %v318
    %v320 = vmul.f32 %v317, %v319
    %v321 = vadd.f32 %v317, %v320
    %vm322 = vweird.f32 %v301
    %vm323 = vweird.f32 %v317
    %vm324 = vmor %vm322, %vm323
    %v325 = vsel %vm324, %v317, %v321
    %v326 = vand.u32 2147483647, %v301
    %vm327 = vcmp.eq.f32.partialorder %v326, 8.507059e+37
    %v328 = vand.u32 %v301, 2147483648
    %v329 = vor.u32 1.1754944e-38, %v328
    %v330 = vsel %vm327, %v329, %v325
    %v331 = vmul.f32 1.0, %v330
    %334 = vrot.lane.b32.xlu0 %v316, 96
    %v335 = vpop.permute.xlu0 %334
    %336 = vrot.lane.b32.xlu0 %v331, 96
    %v337 = vpop.permute.xlu0 %336
    %v340 = vmul.f32 %v49, %v335
    %v341 = vmul.f32 %v50, %v337
    %v342 = vpack.c.bf16 %v341, %v340
    %v343 = vld [vmem:[%s9] sm:$0xf]
    %v344 = vld [vmem:[%s9 + $0x4] sm:$0xf]
    %v345 = vld [vmem:[%s10] sm:$0xf]
    %v346 = vld [vmem:[%s10 + $0x4] sm:$0xf]
    %v349 = vunpack.c.l.b16 %v345
    %v350 = vunpack.c.l.b16 %v346
    %v351 = vpack.c.b16 %v350, %v349
    %353 = vmatpush.bf16.msra.mxu0 0
    %354 = vmatpush.bf16.msra.mxu0 0
    %355 = vmatpush.bf16.msra.mxu0 0
    %356 = vmatpush.bf16.msra.mxu0 0
    %357 = vmatpush.bf16.msra.mxu0 0
    %358 = vmatpush.bf16.msra.mxu0 0
    %359 = vmatpush.bf16.msra.mxu0 0
    %360 = vmatpush.bf16.msra.mxu0 %v351
    %361 = vmatmul.bf16.gmra.mxu0 %v75
    %v362 = vpop.f32.mrf.mxu0
    %v363 = vadd.f32 0.0, %v362
    %v364 = vpop.f32.mrf.mxu0
    %v365 = vadd.f32 0.0, %v364
    %366 = vdwg.mxu0
    %v369 = vunpack.c.l.b16 %v343
    %v370 = vunpack.c.l.b16 %v344
    %v371 = vpack.c.b16 %v370, %v369
    %v374 = vsel %vm73, %v342, 0
    %376 = vmatpush.bf16.msra.mxu0 0
    %377 = vmatpush.bf16.msra.mxu0 0
    %378 = vmatpush.bf16.msra.mxu0 0
    %379 = vmatpush.bf16.msra.mxu0 0
    %380 = vmatpush.bf16.msra.mxu0 0
    %381 = vmatpush.bf16.msra.mxu0 0
    %382 = vmatpush.bf16.msra.mxu0 0
    %383 = vmatpush.bf16.msra.mxu0 %v371
    %384 = vmatmul.bf16.gmra.mxu0 %v374
    %v385 = vpop.f32.mrf.mxu0
    %v386 = vadd.f32 %v363, %v385
    %v387 = vpop.f32.mrf.mxu0
    %v388 = vadd.f32 %v365, %v387
    %389 = vdwg.mxu0
    %v390 = vld [vmem:[%s11] sm:$0x1]
    %v392 = vperm.slane %v390, 0
    %v394 = vadd.f32 %v386, %v392
    %v395 = vadd.f32 %v388, %v392
    %v396 = vtanh.pop %v394
    %v397 = vtanh.pop %v395
    %v398 = vpack.c.bf16 %v397, %v396
    %v399 = vld [vmem:[%s12] sm:$0xf]
    %v400 = vld [vmem:[%s12 + $0x4] sm:$0xf]
    %v401 = vld [vmem:[%s12 + $0x8] sm:$0xf]
    %v402 = vld [vmem:[%s12 + $0xc] sm:$0xf]
    %v403 = vld [vmem:[%s12 + $0x10] sm:$0xf]
    %v404 = vld [vmem:[%s12 + $0x14] sm:$0xf]
    %v405 = vld [vmem:[%s12 + $0x18] sm:$0xf]
    %v406 = vld [vmem:[%s12 + $0x1c] sm:$0xf]
    %v407 = vld [vmem:[%s13] sm:$0x1]
    %v409 = vperm.slane %v407, 0
    %v419 = vunpack.c.l.b16 %v399
    %v420 = vunpack.c.l.b16 %v400
    %v421 = vunpack.c.l.b16 %v401
    %v422 = vunpack.c.l.b16 %v402
    %v423 = vunpack.c.l.b16 %v403
    %v424 = vunpack.c.l.b16 %v404
    %v425 = vunpack.c.l.b16 %v405
    %v426 = vunpack.c.l.b16 %v406
    %v427 = vpack.c.b16 %v420, %v419
    %v428 = vpack.c.b16 %v422, %v421
    %v429 = vpack.c.b16 %v424, %v423
    %v430 = vpack.c.b16 %v426, %v425
    %v436 = vsel %vm262, %v398, 0
    %438 = vmatpush.bf16.msra.mxu0 0
    %439 = vmatpush.bf16.msra.mxu0 0
    %440 = vmatpush.bf16.msra.mxu0 0
    %441 = vmatpush.bf16.msra.mxu0 0
    %442 = vmatpush.bf16.msra.mxu0 %v430
    %443 = vmatpush.bf16.msra.mxu0 %v429
    %444 = vmatpush.bf16.msra.mxu0 %v428
    %445 = vmatpush.bf16.msra.mxu0 %v427
    %446 = vmatmul.bf16.gmra.mxu0 %v436
    %v447 = vpop.f32.mrf.mxu0
    %v448 = vadd.f32 %v409, %v447
    %v449 = vpop.f32.mrf.mxu0
    %v450 = vadd.f32 %v409, %v449
    %451 = vdwg.mxu0
    %v452 = vsub.f32 1.0, %v316
    %v453 = vsub.f32 1.0, %v331
    %v454 = vmul.f32 %v452, %v448
    %v455 = vmul.f32 %v453, %v450
    %v456 = vmul.f32 %v316, %v49
    %v457 = vmul.f32 %v331, %v50
    %v458 = vadd.f32 %v454, %v456
    %v459 = vadd.f32 %v455, %v457
    %462 = vrot.lane.b32.xlu0 %v448, 16
    %v463 = vpop.permute.xlu0 %462
    %464 = vrot.lane.b32.xlu0 %v450, 16
    %v465 = vpop.permute.xlu0 %464
    %v468 = vmul.f32 %v452, %v463
    %v469 = vmul.f32 %v453, %v465
    %472 = vrot.lane.b32.xlu0 %v51, 16
    %v473 = vpop.permute.xlu0 %472
    %474 = vrot.lane.b32.xlu0 %v52, 16
    %v475 = vpop.permute.xlu0 %474
    %v478 = vmul.f32 %v316, %v473
    %v479 = vmul.f32 %v331, %v475
    %v480 = vadd.f32 %v468, %v478
    %v481 = vadd.f32 %v469, %v479
    %v482 = vsel %vm73, %v55, 0.0
    %483 = vadd.xlane.f32.xlu0 %v482
    %v484 = vpop.xlane.xlu0 %483
    %v485 = vsel %vm73, %v56, 0.0
    %486 = vadd.xlane.f32.xlu0 %v485
    %v487 = vpop.xlane.xlu0 %486
    %vm488 = vcmp.gt.f32.partialorder %v484, 0.0
    %vm489 = vcmp.gt.f32.partialorder %v487, 0.0
    %v490 = vsel %vm488, 1, 0
    %v491 = vsel %vm489, 1, 0
    %v492 = vcvt.s32.f32 %v490
    %v493 = vcvt.s32.f32 %v491
    %v494 = vmul.f32 %v492, %v458
    %v495 = vmul.f32 %v493, %v459
    %v496 = vsub.f32 1.0, %v492
    %v497 = vsub.f32 1.0, %v493
    %v498 = vmul.f32 %v496, %v49
    %v499 = vmul.f32 %v497, %v50
    %v500 = vadd.f32 %v494, %v498
    %v501 = vadd.f32 %v495, %v499
    %v502 = vmul.f32 %v492, %v480
    %v503 = vmul.f32 %v493, %v481
    %v504 = vmul.f32 %v496, %v51
    %v505 = vmul.f32 %v497, %v52
    %508 = vrot.lane.b32.xlu0 %v504, 16
    %v509 = vpop.permute.xlu0 %508
    %510 = vrot.lane.b32.xlu0 %v505, 16
    %v511 = vpop.permute.xlu0 %510
    %v514 = vadd.f32 %v502, %v509
    %v515 = vadd.f32 %v503, %v511
    %v516 = vsel %vm73, %v500, %v514
    %v517 = vsel %vm73, %v501, %v515
    %vm518 = vcmask 261120
    %519 = vst.msk [vmem:[#allocation2] sm:$0xff] %vm518, %v516
    %520 = vst.msk [vmem:[#allocation2 + $0x8] sm:$0xff] %vm518, %v517
    // Predicated region
    $region58: #{tpu_custom_call.1} parent=1 // pred_check
      _
    $region59: #{tpu_custom_call.1} parent=1 // pred_check_branch
      %522 = sbr.rel (0) target = $region61
    $region60: #{tpu_custom_call.1} parent=1 // pred_region
      %524 = vsyncadd [#allocation3], 0
      %s525 = sshll.u32 [#allocation2], 4
      %s526 = int_to_ptr.vmem [resolvable:$true] %s525
      %s527 = sshll.u32 %s14, 4
      %s528 = int_to_ptr.hbm [resolvable:$true] %s527
      %533 = dma.vmem_to_hbm [thread:$0]  %s526, 256, %s528, [#allocation3], 128, 128, 8
    $region61: #{tpu_custom_call.1} parent=1 // pred_fallthru
      _
    // Predicated region
    $region62: #{tpu_custom_call.1} parent=1 // pred_check
      _
    $region63: #{tpu_custom_call.1} parent=1 // pred_check_branch
      %535 = sbr.rel (0) target = $region65
    $region64: #{tpu_custom_call.1} parent=1 // pred_region
      %537 = dma.done [#allocation3], 256
    $region65: #{tpu_custom_call.1} parent=1 // pred_fallthru
      _
    %538 = vsyncpa [#allocation3], 1

</llo_original>
